<compile_context>
chip_gen: v7x
topology: tpu7x:2x2x1
jax: 0.10.0
libtpu: 0.0.40
codegen_flags: <defaults>
</compile_context>

<pallas_src>
import jax
import jax.numpy as jnp
from jax.experimental import pallas as pl
from jax.experimental.pallas import tpu as pltpu

NEG_SLOPE = 0.01   # F.leaky_relu default
LANE = 128         # TPU lane width; TB is kept a multiple of this (v5e-safe)


def _round_up(n, m):
    return (n + m - 1) // m * m


def _leaky_relu(x):
    return jnp.where(x > 0, x, NEG_SLOPE * x)


def sender_kernel(xt_ref, w1_ref, b1_ref, w2_ref, b2_ref, w3_ref, b3_ref, out_ref):
    # Transposed dataflow: batch on lanes, features on sublanes.
    #   xt  : [4,  TB]  streamed per grid step
    #   w_k : [out, in] VMEM-resident (PyTorch layout)
    #   b_k : [out, 1]  broadcasts over the lane (batch) axis
    #   out : [V,  TB]  lane-dense full-width stores
    xt = xt_ref[...]                                                      # [4, TB] f32
    h = jnp.dot(w1_ref[...], xt, preferred_element_type=jnp.float32) + b1_ref[...]
    h = _leaky_relu(h)                                                    # [H, TB]
    h = jnp.dot(w2_ref[...], h, preferred_element_type=jnp.float32) + b2_ref[...]
    h = _leaky_relu(h)                                                    # [H, TB]
    logits = jnp.dot(w3_ref[...], h, preferred_element_type=jnp.float32) + b3_ref[...]
    # numerically-stable log_softmax over the feature (sublane) axis, f32 math
    m = jnp.max(logits, axis=0, keepdims=True)                            # [1, TB]
    z = logits - m
    lse = jnp.log(jnp.sum(jnp.exp(z), axis=0, keepdims=True))             # [1, TB]
    out_ref[...] = (z - lse).astype(out_ref.dtype)                        # [V, TB]


def _choose_batch_tile(B, batch_tile):
    """Pick TB: multiple of 128, capped by the padded batch, and split into
    >= 2 grid steps when possible so v7x can use both TensorCores."""
    b_lane = _round_up(B, LANE)
    tb = min(_round_up(batch_tile, LANE), b_lane)
    if b_lane >= 2 * LANE and b_lane // tb < 2:
        tb = _round_up((b_lane + 1) // 2, LANE)
    return tb


def sender_forward(x, params, *, batch_tile=4096):
    """x: [B, 4] float32 rows of [id, r, g, b]; the id column is killed by the
    zero first column of W1, matching the PyTorch x[:, 1:] path (ids=3)."""
    w1, b1, w2, b2, w3, b3 = params
    B = x.shape[0]
    V = w3.shape[0]

    TB = _choose_batch_tile(B, batch_tile)
    B_pad = _round_up(B, TB)
    nb = B_pad // TB

    # Layout plumbing only: present x as a lane-dense [4, B_pad] slab.
    # (x and out are the tiny 4- and 16-row streams; weights dominate nothing.)
    xt = jnp.transpose(x.astype(jnp.float32))                # [4, B]
    if B_pad != B:
        xt = jnp.pad(xt, ((0, 0), (0, B_pad - B)))           # padded cols -> finite junk, sliced off

    resident = lambda a: pl.BlockSpec(a.shape, lambda i: (0, 0))

    out_t = pl.pallas_call(
        sender_kernel,
        out_shape=jax.ShapeDtypeStruct((V, B_pad), jnp.float32),
        grid=(nb,),
        in_specs=[
            pl.BlockSpec((4, TB), lambda i: (0, i)),          # streamed x^T tile
            resident(w1), resident(b1),                       # VMEM-resident params
            resident(w2), resident(b2),
            resident(w3), resident(b3),
        ],
        out_specs=pl.BlockSpec((V, TB), lambda i: (0, i)),    # lane-dense out^T tile
        compiler_params=pltpu.CompilerParams(
            dimension_semantics=("parallel",),                # megacore split on v7x
        ),
    )(xt, w1, b1, w2, b2, w3, b3)
    return jnp.transpose(out_t[:, :B])                        # [B, V]


def sender_reference(x, params):
    """Pure-JAX f32 reference with identical math (for validation)."""
    w1, b1, w2, b2, w3, b3 = params
    h = x.astype(jnp.float32) @ w1.T + b1[:, 0]
    h = _leaky_relu(h)
    h = h @ w2.T + b2[:, 0]
    h = _leaky_relu(h)
    logits = h @ w3.T + b3[:, 0]
    return jax.nn.log_softmax(logits, axis=-1)


def init_sender_params(key, vocab_size=16, num_layers=2, hidden_size=32):
    """Deterministic synthetic init; shapes match the Sender nn.Linear layers.

    Weights are kept in PyTorch (out, in) layout.  W1 is padded to [H, 4]
    with a zero first column so the kernel consumes the full [id, r, g, b]
    row and the id column contributes nothing (== x[:, 1:]).  Biases are
    stored [out, 1] so they broadcast over the lane (batch) axis.
    """
    assert num_layers == 2, "kernel is specialized to the default num_layers=2"
    dims = [(hidden_size, 3), (hidden_size, hidden_size), (vocab_size, hidden_size)]
    params = []
    for i, (fan_out, fan_in) in enumerate(dims):
        kw, kb, key = jax.random.split(key, 3)
        bound = 1.0 / jnp.sqrt(jnp.float32(fan_in))
        w = jax.random.uniform(kw, (fan_out, fan_in), jnp.float32, -bound, bound)
        if i == 0:
            # fold the x[:, 1:] column drop into a zero first weight column
            w = jnp.concatenate([jnp.zeros((fan_out, 1), jnp.float32), w], axis=1)
        b = jax.random.uniform(kb, (fan_out, 1), jnp.float32, -bound, bound)
        params.extend([w, b])
    return tuple(params)


if __name__ == "__main__":
    key = jax.random.PRNGKey(0)
    k_x, k_x2, k_p = jax.random.split(key, 3)

    V, H = 16, 32
    params = init_sender_params(k_p, vocab_size=V, num_layers=2, hidden_size=H)

    # small demo batch: rows of [id, r, g, b] (ids=3 path only uses columns 1:)
    B = 8
    x = jax.random.uniform(k_x, (B, 4), jnp.float32)
    out = jax.block_until_ready(sender_forward(x, params))
    assert out.shape == (B, V)

    # sanity 1: log_softmax rows exponentiate-and-sum to ~1
    row_sums = jnp.sum(jnp.exp(out), axis=-1)
    assert bool(jnp.all(jnp.abs(row_sums - 1.0) < 1e-3))

    # sanity 2: matches the pure-JAX reference (tolerance covers default
    # TPU matmul precision differences between Mosaic and XLA)
    ref = sender_reference(x, params)
    assert bool(jnp.max(jnp.abs(out - ref)) < 1e-1)

    # sanity 3: ragged batch spanning multiple grid steps (exercises the
    # v7x two-TensorCore split path and padded lanes)
    B2 = 300
    x2 = jax.random.uniform(k_x2, (B2, 4), jnp.float32)
    out2 = jax.block_until_ready(sender_forward(x2, params))
    ref2 = sender_reference(x2, params)
    assert out2.shape == (B2, V)
    assert bool(jnp.max(jnp.abs(out2 - ref2)) < 1e-1)
    row_sums2 = jnp.sum(jnp.exp(out2), axis=-1)
    assert bool(jnp.all(jnp.abs(row_sums2 - 1.0) < 1e-3))

    print("KERNEL_OK")
</pallas_src>

<mosaic_0001>
module attributes {stable_mosaic.version = 11 : i64} {
  func.func @sender_kernel(%arg0: i32, %arg1: memref<4x128xf32, #tpu.memory_space<vmem>>, %arg2: memref<32x4xf32, #tpu.memory_space<vmem>>, %arg3: memref<32x1xf32, #tpu.memory_space<vmem>>, %arg4: memref<32x32xf32, #tpu.memory_space<vmem>>, %arg5: memref<32x1xf32, #tpu.memory_space<vmem>>, %arg6: memref<16x32xf32, #tpu.memory_space<vmem>>, %arg7: memref<16x1xf32, #tpu.memory_space<vmem>>, %arg8: memref<16x128xf32, #tpu.memory_space<vmem>>) attributes {dimension_semantics = [#tpu.dimension_semantics<parallel>], iteration_bounds = array<i64: 1>, scalar_prefetch = 0 : i64, scratch_operands = 0 : i64, tpu.core_type = #tpu.core_type<tc>, window_params = [{transform_indices = @transform_0, window_bounds = array<i64: 4, 128>}, {pipeline_mode = #tpu.pipeline_mode<synchronous>, transform_indices = @transform_1, window_bounds = array<i64: 32, 4>}, {pipeline_mode = #tpu.pipeline_mode<synchronous>, transform_indices = @transform_2, window_bounds = array<i64: 32, 1>}, {pipeline_mode = #tpu.pipeline_mode<synchronous>, transform_indices = @transform_3, window_bounds = array<i64: 32, 32>}, {pipeline_mode = #tpu.pipeline_mode<synchronous>, transform_indices = @transform_4, window_bounds = array<i64: 32, 1>}, {pipeline_mode = #tpu.pipeline_mode<synchronous>, transform_indices = @transform_5, window_bounds = array<i64: 16, 32>}, {pipeline_mode = #tpu.pipeline_mode<synchronous>, transform_indices = @transform_6, window_bounds = array<i64: 16, 1>}, {transform_indices = @transform_7, window_bounds = array<i64: 16, 128>}]} {
    %c0 = arith.constant 0 : index
    %c0_0 = arith.constant 0 : index
    %0 = vector.load %arg1[%c0, %c0_0] : memref<4x128xf32, #tpu.memory_space<vmem>>, vector<4x128xf32>
    %c0_1 = arith.constant 0 : index
    %c0_2 = arith.constant 0 : index
    %1 = vector.load %arg2[%c0_1, %c0_2] : memref<32x4xf32, #tpu.memory_space<vmem>>, vector<32x4xf32>
    %cst = arith.constant dense<0.000000e+00> : vector<32x128xf32>
    %2 = tpu.matmul %1, %0, %cst {dimension_numbers = #tpu.dot_dimension_numbers<[1], [0], [0], [1], [0, 0, 1, 1], [], []>} : vector<32x4xf32>, vector<4x128xf32>, vector<32x128xf32> -> vector<32x128xf32>
    %c0_3 = arith.constant 0 : index
    %c0_4 = arith.constant 0 : index
    %3 = vector.load %arg3[%c0_3, %c0_4] : memref<32x1xf32, #tpu.memory_space<vmem>>, vector<32x1xf32>
    %4 = vector.broadcast %3 : vector<32x1xf32> to vector<32x128xf32>
    %5 = arith.addf %2, %4 : vector<32x128xf32>
    %cst_5 = arith.constant 0.000000e+00 : f32
    %6 = vector.broadcast %cst_5 : f32 to vector<32x128xf32>
    %7 = arith.cmpf ogt, %5, %6 : vector<32x128xf32>
    %cst_6 = arith.constant 0.00999999977 : f32
    %8 = vector.broadcast %cst_6 : f32 to vector<32x128xf32>
    %9 = arith.mulf %8, %5 : vector<32x128xf32>
    %10 = arith.select %7, %5, %9 : vector<32x128xi1>, vector<32x128xf32>
    %c0_7 = arith.constant 0 : index
    %c0_8 = arith.constant 0 : index
    %11 = vector.load %arg4[%c0_7, %c0_8] : memref<32x32xf32, #tpu.memory_space<vmem>>, vector<32x32xf32>
    %cst_9 = arith.constant dense<0.000000e+00> : vector<32x128xf32>
    %12 = tpu.matmul %11, %10, %cst_9 {dimension_numbers = #tpu.dot_dimension_numbers<[1], [0], [0], [1], [0, 0, 1, 1], [], []>} : vector<32x32xf32>, vector<32x128xf32>, vector<32x128xf32> -> vector<32x128xf32>
    %c0_10 = arith.constant 0 : index
    %c0_11 = arith.constant 0 : index
    %13 = vector.load %arg5[%c0_10, %c0_11] : memref<32x1xf32, #tpu.memory_space<vmem>>, vector<32x1xf32>
    %14 = vector.broadcast %13 : vector<32x1xf32> to vector<32x128xf32>
    %15 = arith.addf %12, %14 : vector<32x128xf32>
    %cst_12 = arith.constant 0.000000e+00 : f32
    %16 = vector.broadcast %cst_12 : f32 to vector<32x128xf32>
    %17 = arith.cmpf ogt, %15, %16 : vector<32x128xf32>
    %cst_13 = arith.constant 0.00999999977 : f32
    %18 = vector.broadcast %cst_13 : f32 to vector<32x128xf32>
    %19 = arith.mulf %18, %15 : vector<32x128xf32>
    %20 = arith.select %17, %15, %19 : vector<32x128xi1>, vector<32x128xf32>
    %c0_14 = arith.constant 0 : index
    %c0_15 = arith.constant 0 : index
    %21 = vector.load %arg6[%c0_14, %c0_15] : memref<16x32xf32, #tpu.memory_space<vmem>>, vector<16x32xf32>
    %cst_16 = arith.constant dense<0.000000e+00> : vector<16x128xf32>
    %22 = tpu.matmul %21, %20, %cst_16 {dimension_numbers = #tpu.dot_dimension_numbers<[1], [0], [0], [1], [0, 0, 1, 1], [], []>} : vector<16x32xf32>, vector<32x128xf32>, vector<16x128xf32> -> vector<16x128xf32>
    %c0_17 = arith.constant 0 : index
    %c0_18 = arith.constant 0 : index
    %23 = vector.load %arg7[%c0_17, %c0_18] : memref<16x1xf32, #tpu.memory_space<vmem>>, vector<16x1xf32>
    %24 = vector.broadcast %23 : vector<16x1xf32> to vector<16x128xf32>
    %25 = arith.addf %22, %24 : vector<16x128xf32>
    %cst_19 = arith.constant dense<0xFF800000> : vector<128xf32>
    %26 = vector.multi_reduction <maximumf>, %25, %cst_19 [0] : vector<16x128xf32> to vector<128xf32>
    %27 = vector.shape_cast %26 : vector<128xf32> to vector<1x128xf32>
    %28 = vector.broadcast %27 : vector<1x128xf32> to vector<16x128xf32>
    %29 = arith.subf %25, %28 : vector<16x128xf32>
    %30 = math.exp %29 : vector<16x128xf32>
    %cst_20 = arith.constant dense<0.000000e+00> : vector<128xf32>
    %31 = vector.multi_reduction <add>, %30, %cst_20 [0] : vector<16x128xf32> to vector<128xf32>
    %32 = vector.shape_cast %31 : vector<128xf32> to vector<1x128xf32>
    %33 = math.log %32 : vector<1x128xf32>
    %34 = vector.broadcast %33 : vector<1x128xf32> to vector<16x128xf32>
    %35 = arith.subf %29, %34 : vector<16x128xf32>
    %c0_21 = arith.constant 0 : index
    %c0_22 = arith.constant 0 : index
    %36 = vector.load %arg8[%c0_21, %c0_22] : memref<16x128xf32, #tpu.memory_space<vmem>>, vector<16x128xf32>
    tpu.vector_store %arg8[%c0_21, %c0_22], %35 {strides = array<i32>} : memref<16x128xf32, #tpu.memory_space<vmem>>, vector<16x128xf32>,
    return
  }
  func.func @transform_0(%arg0: i32) -> (i32, i32) {
    %c0_i32 = arith.constant 0 : i32
    %c0_i32_0 = arith.constant 0 : i32
    return %c0_i32, %arg0 : i32, i32
  }
  func.func @transform_1(%arg0: i32) -> (i32, i32) {
    %c0_i32 = arith.constant 0 : i32
    %c0_i32_0 = arith.constant 0 : i32
    %c0_i32_1 = arith.constant 0 : i32
    return %c0_i32, %c0_i32_0 : i32, i32
  }
  func.func @transform_2(%arg0: i32) -> (i32, i32) {
    %c0_i32 = arith.constant 0 : i32
    %c0_i32_0 = arith.constant 0 : i32
    %c0_i32_1 = arith.constant 0 : i32
    return %c0_i32, %c0_i32_0 : i32, i32
  }
  func.func @transform_3(%arg0: i32) -> (i32, i32) {
    %c0_i32 = arith.constant 0 : i32
    %c0_i32_0 = arith.constant 0 : i32
    %c0_i32_1 = arith.constant 0 : i32
    return %c0_i32, %c0_i32_0 : i32, i32
  }
  func.func @transform_4(%arg0: i32) -> (i32, i32) {
    %c0_i32 = arith.constant 0 : i32
    %c0_i32_0 = arith.constant 0 : i32
    %c0_i32_1 = arith.constant 0 : i32
    return %c0_i32, %c0_i32_0 : i32, i32
  }
  func.func @transform_5(%arg0: i32) -> (i32, i32) {
    %c0_i32 = arith.constant 0 : i32
    %c0_i32_0 = arith.constant 0 : i32
    %c0_i32_1 = arith.constant 0 : i32
    return %c0_i32, %c0_i32_0 : i32, i32
  }
  func.func @transform_6(%arg0: i32) -> (i32, i32) {
    %c0_i32 = arith.constant 0 : i32
    %c0_i32_0 = arith.constant 0 : i32
    %c0_i32_1 = arith.constant 0 : i32
    return %c0_i32, %c0_i32_0 : i32, i32
  }
  func.func @transform_7(%arg0: i32) -> (i32, i32) {
    %c0_i32 = arith.constant 0 : i32
    %c0_i32_0 = arith.constant 0 : i32
    return %c0_i32, %arg0 : i32, i32
  }
}

</mosaic_0001>

<llo_original>
// kernel: tpu_custom_call.1
$region0: #{tpu_custom_call.1}
  #allocation0 [shape = 'u32[]', space=smem, size = 0x4, offset = 0x4, fixed_abs, tag = 'smem constant byte address 0x4 - core index']
  #allocation1 [shape = 'u32[144,128]{1,0:T(1,128)}', space=vmem, size = 0x12000, scoped, tag = 'internal scratch']
  %s0 = inlined_call_operand.vmem [shape: f32[4,128], index: 0, kind: input, shape index: {}]
  %s1 = inlined_call_operand.vmem [shape: f32[32,4], index: 1, kind: input, shape index: {}]
  %s2 = inlined_call_operand.vmem [shape: f32[32,1], index: 2, kind: input, shape index: {}]
  %s3 = inlined_call_operand.vmem [shape: f32[32,32], index: 3, kind: input, shape index: {}]
  %s4 = inlined_call_operand.vmem [shape: f32[32,1], index: 4, kind: input, shape index: {}]
  %s5 = inlined_call_operand.vmem [shape: f32[16,32], index: 5, kind: input, shape index: {}]
  %s6 = inlined_call_operand.vmem [shape: f32[16,1], index: 6, kind: input, shape index: {}]
  %s7 = inlined_call_operand.hbm [shape: f32[16,128], index: 7, kind: output, shape index: {}]
  %s8 = sld [smem:[#allocation0]]
  $region38: #{tpu_custom_call.1} parent=0
    _
  %s10 = ssub.s32 1, %s8
  %s11 = scalar_select 0, %s10, %s8
  $region1: #{tpu_custom_call.1} parent=0
    #allocation2 [shape = 'u8[8192]{0}', space=vmem, size = 0x2000, scoped, tag = 'output window, operand 0, single buffered']
    #allocation3 [shape = 's32[1]{0}', space=sflag, size = 0x4, scoped, tag = 'scoped memory for tpu_custom_call.1']
    %12 = vsyncpa [#allocation3], 0
    // Predicated region
    $region2: #{tpu_custom_call.1} parent=1 // pred_check
      _
    $region3: #{tpu_custom_call.1} parent=1 // pred_check_branch
      %14 = sbr.rel (0) target = $region5
    $region4: #{tpu_custom_call.1} parent=1 // pred_region
      _
    $region5: #{tpu_custom_call.1} parent=1 // pred_fallthru
      _
    // Predicated region
    $region6: #{tpu_custom_call.1} parent=1 // pred_check
      _
    $region7: #{tpu_custom_call.1} parent=1 // pred_check_branch
      %16 = sbr.rel (0) target = $region9
    $region8: #{tpu_custom_call.1} parent=1 // pred_region
      _
    $region9: #{tpu_custom_call.1} parent=1 // pred_fallthru
      _
    // Predicated region
    $region10: #{tpu_custom_call.1} parent=1 // pred_check
      _
    $region11: #{tpu_custom_call.1} parent=1 // pred_check_branch
      %18 = sbr.rel (0) target = $region13
    $region12: #{tpu_custom_call.1} parent=1 // pred_region
      _
    $region13: #{tpu_custom_call.1} parent=1 // pred_fallthru
      _
    // Predicated region
    $region14: #{tpu_custom_call.1} parent=1 // pred_check
      _
    $region15: #{tpu_custom_call.1} parent=1 // pred_check_branch
      %20 = sbr.rel (0) target = $region17
    $region16: #{tpu_custom_call.1} parent=1 // pred_region
      _
    $region17: #{tpu_custom_call.1} parent=1 // pred_fallthru
      _
    // Predicated region
    $region18: #{tpu_custom_call.1} parent=1 // pred_check
      _
    $region19: #{tpu_custom_call.1} parent=1 // pred_check_branch
      %22 = sbr.rel (0) target = $region21
    $region20: #{tpu_custom_call.1} parent=1 // pred_region
      _
    $region21: #{tpu_custom_call.1} parent=1 // pred_fallthru
      _
    // Predicated region
    $region22: #{tpu_custom_call.1} parent=1 // pred_check
      _
    $region23: #{tpu_custom_call.1} parent=1 // pred_check_branch
      %24 = sbr.rel (0) target = $region25
    $region24: #{tpu_custom_call.1} parent=1 // pred_region
      _
    $region25: #{tpu_custom_call.1} parent=1 // pred_fallthru
      _
    // Predicated region
    $region26: #{tpu_custom_call.1} parent=1 // pred_check
      _
    $region27: #{tpu_custom_call.1} parent=1 // pred_check_branch
      %26 = sbr.rel (0) target = $region29
    $region28: #{tpu_custom_call.1} parent=1 // pred_region
      _
    $region29: #{tpu_custom_call.1} parent=1 // pred_fallthru
      _
    %v27 = vld [vmem:[%s0] sm:$0xf]
    %v28 = vld [vmem:[%s1] sm:$0xff]
    %v29 = vld [vmem:[%s1 + $0x8] sm:$0xff]
    %v30 = vld [vmem:[%s1 + $0x10] sm:$0xff]
    %v31 = vld [vmem:[%s1 + $0x18] sm:$0xff]
    %v32 = vld [vmem:[%s2] sm:$0xff]
    %v33 = vld [vmem:[%s2 + $0x8] sm:$0xff]
    %v34 = vld [vmem:[%s2 + $0x10] sm:$0xff]
    %v35 = vld [vmem:[%s2 + $0x18] sm:$0xff]
    %37 = vset.pattern.permute.xlu0 0
    %38 = vperm.xlu0 %37, %v32
    %v39 = vpop.permute.xlu0 %38
    %42 = vset.pattern.permute.xlu0 0
    %43 = vperm.xlu0 %42, %v33
    %v44 = vpop.permute.xlu0 %43
    %47 = vset.pattern.permute.xlu0 0
    %48 = vperm.xlu0 %47, %v34
    %v49 = vpop.permute.xlu0 %48
    %52 = vset.pattern.permute.xlu0 0
    %53 = vperm.xlu0 %52, %v35
    %v54 = vpop.permute.xlu0 %53
    %vm56 = vcmask 31744
    %v58 = vsel %vm56, %v28, 0
    %v61 = vsel %vm56, %v29, 0
    %v64 = vsel %vm56, %v30, 0
    %v67 = vsel %vm56, %v31, 0
    %vm69 = vcmask 1043456
    %v71 = vsel %vm69, %v27, 0
    %73 = vmatprep.subr.mxu0 0.0
    %74 = vmatpush1.msra.mxu0 %v71
    %75 = vmatprep.subr.mxu0 0.0
    %76 = vmatpush1.msra.mxu0 0.0
    %77 = vmatprep.subr.mxu0 0.0
    %78 = vmatpush1.msra.mxu0 0.0
    %79 = vmatprep.subr.mxu0 0.0
    %80 = vmatpush1.msra.mxu0 0.0
    %81 = vmatprep.subr.mxu0 0.0
    %82 = vmatpush1.msra.mxu0 0.0
    %83 = vmatprep.subr.mxu0 0.0
    %84 = vmatpush1.msra.mxu0 0.0
    %85 = vmatprep.subr.mxu0 0.0
    %86 = vmatpush1.msra.mxu0 0.0
    %87 = vmatprep.subr.mxu0 0.0
    %88 = vmatpush1.msra.mxu0 0.0
    %89 = vmatprep.subr.mxu0 0.0
    %90 = vmatpush1.msra.mxu0 0.0
    %91 = vmatprep.subr.mxu0 0.0
    %92 = vmatpush1.msra.mxu0 0.0
    %93 = vmatprep.subr.mxu0 0.0
    %94 = vmatpush1.msra.mxu0 0.0
    %95 = vmatprep.subr.mxu0 0.0
    %96 = vmatpush1.msra.mxu0 0.0
    %97 = vmatprep.subr.mxu0 0.0
    %98 = vmatpush1.msra.mxu0 0.0
    %99 = vmatprep.subr.mxu0 0.0
    %100 = vmatpush1.msra.mxu0 0.0
    %101 = vmatprep.subr.mxu0 0.0
    %102 = vmatpush1.msra.mxu0 0.0
    %103 = vmatprep.subr.mxu0 0.0
    %104 = vmatpush1.msra.mxu0 0.0
    %105 = vmatprep.subr.mxu0 0.0
    %106 = vmatpush1.msra.mxu0 0.0
    %107 = vmatprep.subr.mxu0 0.0
    %108 = vmatpush1.msra.mxu0 0.0
    %109 = vmatprep.subr.mxu0 0.0
    %110 = vmatpush1.msra.mxu0 0.0
    %111 = vmatprep.subr.mxu0 0.0
    %112 = vmatpush1.msra.mxu0 0.0
    %113 = vmatprep.subr.mxu0 0.0
    %114 = vmatpush1.msra.mxu0 0.0
    %115 = vmatprep.subr.mxu0 0.0
    %116 = vmatpush1.msra.mxu0 0.0
    %117 = vmatprep.subr.mxu0 0.0
    %118 = vmatpush1.msra.mxu0 0.0
    %119 = vmatprep.subr.mxu0 0.0
    %120 = vmatpush1.msra.mxu0 0.0
    %121 = vmatprep.subr.mxu0 0.0
    %122 = vmatpush1.msra.mxu0 0.0
    %123 = vmatprep.subr.mxu0 0.0
    %124 = vmatpush1.msra.mxu0 0.0
    %125 = vmatprep.subr.mxu0 0.0
    %126 = vmatpush1.msra.mxu0 0.0
    %127 = vmatprep.subr.mxu0 0.0
    %128 = vmatpush1.msra.mxu0 0.0
    %129 = vmatprep.subr.mxu0 0.0
    %130 = vmatpush1.msra.mxu0 0.0
    %131 = vmatprep.subr.mxu0 0.0
    %132 = vmatpush1.msra.mxu0 0.0
    %133 = vmatprep.subr.mxu0 0.0
    %134 = vmatpush1.msra.mxu0 0.0
    %135 = vmatprep.subr.mxu0 0.0
    %136 = vmatpush1.msra.mxu0 0.0
    %137 = vmatprep.mubr.f32.mxu0 0.0
    %138 = vmatmul.mubr.f32.gmra.mrb[0].mxu0 %v58
    %v139 = vpop.f32.mrb[0].mxu0
    %v140 = vadd.f32 %v39, %v139
    %v141 = vpop.f32.mrb[0].mxu0
    %142 = vmatprep.mubr.f32.mxu0 0.0
    %143 = vmatmul.mubr.f32.gmra.mrb[0].mxu0 %v61
    %v144 = vpop.f32.mrb[0].mxu0
    %v145 = vadd.f32 %v44, %v144
    %v146 = vpop.f32.mrb[0].mxu0
    %147 = vmatprep.mubr.f32.mxu0 0.0
    %148 = vmatmul.mubr.f32.gmra.mrb[0].mxu0 %v64
    %v149 = vpop.f32.mrb[0].mxu0
    %v150 = vadd.f32 %v49, %v149
    %v151 = vpop.f32.mrb[0].mxu0
    %152 = vmatprep.mubr.f32.mxu0 0.0
    %153 = vmatmul.mubr.f32.gmra.mrb[0].mxu0 %v67
    %v154 = vpop.f32.mrb[0].mxu0
    %v155 = vadd.f32 %v54, %v154
    %v156 = vpop.f32.mrb[0].mxu0
    %157 = vdwg.mxu0
    %vm158 = vcmp.gt.f32.partialorder %v140, 0.0
    %vm159 = vcmp.gt.f32.partialorder %v145, 0.0
    %vm160 = vcmp.gt.f32.partialorder %v150, 0.0
    %vm161 = vcmp.gt.f32.partialorder %v155, 0.0
    %v162 = vmul.f32 %v140, 0.01
    %v163 = vmul.f32 %v145, 0.01
    %v164 = vmul.f32 %v150, 0.01
    %v165 = vmul.f32 %v155, 0.01
    %v166 = vsel %vm158, %v140, %v162
    %v167 = vsel %vm159, %v145, %v163
    %v168 = vsel %vm160, %v150, %v164
    %v169 = vsel %vm161, %v155, %v165
    %v170 = vld [vmem:[%s3] sm:$0xff]
    %v171 = vld [vmem:[%s3 + $0x8] sm:$0xff]
    %v172 = vld [vmem:[%s3 + $0x10] sm:$0xff]
    %v173 = vld [vmem:[%s3 + $0x18] sm:$0xff]
    %v174 = vld [vmem:[%s4] sm:$0xff]
    %v175 = vld [vmem:[%s4 + $0x8] sm:$0xff]
    %v176 = vld [vmem:[%s4 + $0x10] sm:$0xff]
    %v177 = vld [vmem:[%s4 + $0x18] sm:$0xff]
    %179 = vset.pattern.permute.xlu0 0
    %180 = vperm.xlu0 %179, %v174
    %v181 = vpop.permute.xlu0 %180
    %184 = vset.pattern.permute.xlu0 0
    %185 = vperm.xlu0 %184, %v175
    %v186 = vpop.permute.xlu0 %185
    %189 = vset.pattern.permute.xlu0 0
    %190 = vperm.xlu0 %189, %v176
    %v191 = vpop.permute.xlu0 %190
    %194 = vset.pattern.permute.xlu0 0
    %195 = vperm.xlu0 %194, %v177
    %v196 = vpop.permute.xlu0 %195
    %vm198 = vcmask 261120
    %v200 = vsel %vm198, %v170, 0
    %v203 = vsel %vm198, %v171, 0
    %v206 = vsel %vm198, %v172, 0
    %v209 = vsel %vm198, %v173, 0
    %211 = vmatprep.subr.mxu0 0.0
    %212 = vmatpush1.msra.mxu0 %v166
    %213 = vmatprep.subr.mxu0 0.0
    %214 = vmatpush1.msra.mxu0 %v167
    %215 = vmatprep.subr.mxu0 0.0
    %216 = vmatpush1.msra.mxu0 %v168
    %217 = vmatprep.subr.mxu0 0.0
    %218 = vmatpush1.msra.mxu0 %v169
    %219 = vmatprep.subr.mxu0 0.0
    %220 = vmatpush1.msra.mxu0 0.0
    %221 = vmatprep.subr.mxu0 0.0
    %222 = vmatpush1.msra.mxu0 0.0
    %223 = vmatprep.subr.mxu0 0.0
    %224 = vmatpush1.msra.mxu0 0.0
    %225 = vmatprep.subr.mxu0 0.0
    %226 = vmatpush1.msra.mxu0 0.0
    %227 = vmatprep.subr.mxu0 0.0
    %228 = vmatpush1.msra.mxu0 0.0
    %229 = vmatprep.subr.mxu0 0.0
    %230 = vmatpush1.msra.mxu0 0.0
    %231 = vmatprep.subr.mxu0 0.0
    %232 = vmatpush1.msra.mxu0 0.0
    %233 = vmatprep.subr.mxu0 0.0
    %234 = vmatpush1.msra.mxu0 0.0
    %235 = vmatprep.subr.mxu0 0.0
    %236 = vmatpush1.msra.mxu0 0.0
    %237 = vmatprep.subr.mxu0 0.0
    %238 = vmatpush1.msra.mxu0 0.0
    %239 = vmatprep.subr.mxu0 0.0
    %240 = vmatpush1.msra.mxu0 0.0
    %241 = vmatprep.subr.mxu0 0.0
    %242 = vmatpush1.msra.mxu0 0.0
    %243 = vmatprep.subr.mxu0 0.0
    %244 = vmatpush1.msra.mxu0 0.0
    %245 = vmatprep.subr.mxu0 0.0
    %246 = vmatpush1.msra.mxu0 0.0
    %247 = vmatprep.subr.mxu0 0.0
    %248 = vmatpush1.msra.mxu0 0.0
    %249 = vmatprep.subr.mxu0 0.0
    %250 = vmatpush1.msra.mxu0 0.0
    %251 = vmatprep.subr.mxu0 0.0
    %252 = vmatpush1.msra.mxu0 0.0
    %253 = vmatprep.subr.mxu0 0.0
    %254 = vmatpush1.msra.mxu0 0.0
    %255 = vmatprep.subr.mxu0 0.0
    %256 = vmatpush1.msra.mxu0 0.0
    %257 = vmatprep.subr.mxu0 0.0
    %258 = vmatpush1.msra.mxu0 0.0
    %259 = vmatprep.subr.mxu0 0.0
    %260 = vmatpush1.msra.mxu0 0.0
    %261 = vmatprep.subr.mxu0 0.0
    %262 = vmatpush1.msra.mxu0 0.0
    %263 = vmatprep.subr.mxu0 0.0
    %264 = vmatpush1.msra.mxu0 0.0
    %265 = vmatprep.subr.mxu0 0.0
    %266 = vmatpush1.msra.mxu0 0.0
    %267 = vmatprep.subr.mxu0 0.0
    %268 = vmatpush1.msra.mxu0 0.0
    %269 = vmatprep.subr.mxu0 0.0
    %270 = vmatpush1.msra.mxu0 0.0
    %271 = vmatprep.subr.mxu0 0.0
    %272 = vmatpush1.msra.mxu0 0.0
    %273 = vmatprep.subr.mxu0 0.0
    %274 = vmatpush1.msra.mxu0 0.0
    %275 = vmatprep.mubr.f32.mxu0 0.0
    %276 = vmatmul.mubr.f32.gmra.mrb[0].mxu0 %v200
    %v277 = vpop.f32.mrb[0].mxu0
    %v278 = vadd.f32 %v181, %v277
    %v279 = vpop.f32.mrb[0].mxu0
    %280 = vmatprep.mubr.f32.mxu0 0.0
    %281 = vmatmul.mubr.f32.gmra.mrb[0].mxu0 %v203
    %v282 = vpop.f32.mrb[0].mxu0
    %v283 = vadd.f32 %v186, %v282
    %v284 = vpop.f32.mrb[0].mxu0
    %285 = vmatprep.mubr.f32.mxu0 0.0
    %286 = vmatmul.mubr.f32.gmra.mrb[0].mxu0 %v206
    %v287 = vpop.f32.mrb[0].mxu0
    %v288 = vadd.f32 %v191, %v287
    %v289 = vpop.f32.mrb[0].mxu0
    %290 = vmatprep.mubr.f32.mxu0 0.0
    %291 = vmatmul.mubr.f32.gmra.mrb[0].mxu0 %v209
    %v292 = vpop.f32.mrb[0].mxu0
    %v293 = vadd.f32 %v196, %v292
    %v294 = vpop.f32.mrb[0].mxu0
    %295 = vdwg.mxu0
    %vm296 = vcmp.gt.f32.partialorder %v278, 0.0
    %vm297 = vcmp.gt.f32.partialorder %v283, 0.0
    %vm298 = vcmp.gt.f32.partialorder %v288, 0.0
    %vm299 = vcmp.gt.f32.partialorder %v293, 0.0
    %v300 = vmul.f32 %v278, 0.01
    %v301 = vmul.f32 %v283, 0.01
    %v302 = vmul.f32 %v288, 0.01
    %v303 = vmul.f32 %v293, 0.01
    %v304 = vsel %vm296, %v278, %v300
    %v305 = vsel %vm297, %v283, %v301
    %v306 = vsel %vm298, %v288, %v302
    %v307 = vsel %vm299, %v293, %v303
    %v308 = vld [vmem:[%s5] sm:$0xff]
    %v309 = vld [vmem:[%s5 + $0x8] sm:$0xff]
    %v310 = vld [vmem:[%s6] sm:$0xff]
    %v311 = vld [vmem:[%s6 + $0x8] sm:$0xff]
    %313 = vset.pattern.permute.xlu0 0
    %314 = vperm.xlu0 %313, %v310
    %v315 = vpop.permute.xlu0 %314
    %318 = vset.pattern.permute.xlu0 0
    %319 = vperm.xlu0 %318, %v311
    %v320 = vpop.permute.xlu0 %319
    %v323 = vsel %vm198, %v308, 0
    %v326 = vsel %vm198, %v309, 0
    %328 = vmatprep.subr.mxu0 0.0
    %329 = vmatpush1.msra.mxu0 %v304
    %330 = vmatprep.subr.mxu0 0.0
    %331 = vmatpush1.msra.mxu0 %v305
    %332 = vmatprep.subr.mxu0 0.0
    %333 = vmatpush1.msra.mxu0 %v306
    %334 = vmatprep.subr.mxu0 0.0
    %335 = vmatpush1.msra.mxu0 %v307
    %336 = vmatprep.subr.mxu0 0.0
    %337 = vmatpush1.msra.mxu0 0.0
    %338 = vmatprep.subr.mxu0 0.0
    %339 = vmatpush1.msra.mxu0 0.0
    %340 = vmatprep.subr.mxu0 0.0
    %341 = vmatpush1.msra.mxu0 0.0
    %342 = vmatprep.subr.mxu0 0.0
    %343 = vmatpush1.msra.mxu0 0.0
    %344 = vmatprep.subr.mxu0 0.0
    %345 = vmatpush1.msra.mxu0 0.0
    %346 = vmatprep.subr.mxu0 0.0
    %347 = vmatpush1.msra.mxu0 0.0
    %348 = vmatprep.subr.mxu0 0.0
    %349 = vmatpush1.msra.mxu0 0.0
    %350 = vmatprep.subr.mxu0 0.0
    %351 = vmatpush1.msra.mxu0 0.0
    %352 = vmatprep.subr.mxu0 0.0
    %353 = vmatpush1.msra.mxu0 0.0
    %354 = vmatprep.subr.mxu0 0.0
    %355 = vmatpush1.msra.mxu0 0.0
    %356 = vmatprep.subr.mxu0 0.0
    %357 = vmatpush1.msra.mxu0 0.0
    %358 = vmatprep.subr.mxu0 0.0
    %359 = vmatpush1.msra.mxu0 0.0
    %360 = vmatprep.subr.mxu0 0.0
    %361 = vmatpush1.msra.mxu0 0.0
    %362 = vmatprep.subr.mxu0 0.0
    %363 = vmatpush1.msra.mxu0 0.0
    %364 = vmatprep.subr.mxu0 0.0
    %365 = vmatpush1.msra.mxu0 0.0
    %366 = vmatprep.subr.mxu0 0.0
    %367 = vmatpush1.msra.mxu0 0.0
    %368 = vmatprep.subr.mxu0 0.0
    %369 = vmatpush1.msra.mxu0 0.0
    %370 = vmatprep.subr.mxu0 0.0
    %371 = vmatpush1.msra.mxu0 0.0
    %372 = vmatprep.subr.mxu0 0.0
    %373 = vmatpush1.msra.mxu0 0.0
    %374 = vmatprep.subr.mxu0 0.0
    %375 = vmatpush1.msra.mxu0 0.0
    %376 = vmatprep.subr.mxu0 0.0
    %377 = vmatpush1.msra.mxu0 0.0
    %378 = vmatprep.subr.mxu0 0.0
    %379 = vmatpush1.msra.mxu0 0.0
    %380 = vmatprep.subr.mxu0 0.0
    %381 = vmatpush1.msra.mxu0 0.0
    %382 = vmatprep.subr.mxu0 0.0
    %383 = vmatpush1.msra.mxu0 0.0
    %384 = vmatprep.subr.mxu0 0.0
    %385 = vmatpush1.msra.mxu0 0.0
    %386 = vmatprep.subr.mxu0 0.0
    %387 = vmatpush1.msra.mxu0 0.0
    %388 = vmatprep.subr.mxu0 0.0
    %389 = vmatpush1.msra.mxu0 0.0
    %390 = vmatprep.subr.mxu0 0.0
    %391 = vmatpush1.msra.mxu0 0.0
    %392 = vmatprep.mubr.f32.mxu0 0.0
    %393 = vmatmul.mubr.f32.gmra.mrb[0].mxu0 %v323
    %v394 = vpop.f32.mrb[0].mxu0
    %v395 = vadd.f32 %v315, %v394
    %v396 = vpop.f32.mrb[0].mxu0
    %397 = vmatprep.mubr.f32.mxu0 0.0
    %398 = vmatmul.mubr.f32.gmra.mrb[0].mxu0 %v326
    %v399 = vpop.f32.mrb[0].mxu0
    %v400 = vadd.f32 %v320, %v399
    %v401 = vpop.f32.mrb[0].mxu0
    %402 = vdwg.mxu0
    %v403 = vmax.f32 %v395, %v400
    %v404 = vrot.slane %v403, 4
    %v405 = vmax.f32 %v403, %v404
    %v406 = vrot.slane %v405, 2
    %v407 = vmax.f32 %v405, %v406
    %v408 = vrot.slane %v407, 1
    %v409 = vmax.f32 %v407, %v408
    %v410 = vsub.f32 %v395, %v409
    %v411 = vsub.f32 %v400, %v409
    %v412 = vmul.f32 %v410, 1.442695
    %v413 = vpow.pop %v412
    %v414 = vmul.f32 %v411, 1.442695
    %v415 = vpow.pop %v414
    %v416 = vadd.f32 %v413, %v415
    %v417 = vrot.slane %v416, 4
    %v418 = vadd.f32 %v416, %v417
    %v419 = vrot.slane %v418, 2
    %v420 = vadd.f32 %v418, %v419
    %v421 = vrot.slane %v420, 1
    %v422 = vadd.f32 %v420, %v421
    %v423 = vlog2.pop %v422
    %v424 = vmul.f32 %v423, 0.6931472
    %v425 = vsub.f32 %v410, %v424
    %v426 = vsub.f32 %v411, %v424
    %427 = vst [vmem:[#allocation2] sm:$0xff] %v425
    %428 = vst [vmem:[#allocation2 + $0x8] sm:$0xff] %v426
    // Predicated region
    $region30: #{tpu_custom_call.1} parent=1 // pred_check
      _
    $region31: #{tpu_custom_call.1} parent=1 // pred_check_branch
      %430 = sbr.rel (0) target = $region33
    $region32: #{tpu_custom_call.1} parent=1 // pred_region
      %s432 = ssub.s32 256, 256
      %433 = vsyncadd [#allocation3], %s432
      %s434 = sshll.u32 [#allocation2], 4
      %s435 = int_to_ptr.vmem [resolvable:$true] %s434
      %440 = dma.vmem_to_hbm [thread:$0]  %s435, 256, %s7, [#allocation3], 128, 128, 8
    $region33: #{tpu_custom_call.1} parent=1 // pred_fallthru
      _
    // Predicated region
    $region34: #{tpu_custom_call.1} parent=1 // pred_check
      _
    $region35: #{tpu_custom_call.1} parent=1 // pred_check_branch
      %442 = sbr.rel (0) target = $region37
    $region36: #{tpu_custom_call.1} parent=1 // pred_region
      %443 = dma.done [#allocation3], 256
    $region37: #{tpu_custom_call.1} parent=1 // pred_fallthru
      _
    %444 = vsyncpa [#allocation3], 1

</llo_original>
